<compile_context>
chip_gen: v7x
topology: tpu7x:2x2x1
jax: 0.10.0
libtpu: 0.0.40
codegen_flags: <defaults>
</compile_context>

<pallas_src>
import functools
import math

import jax
import jax.numpy as jnp
from jax.experimental import pallas as pl
from jax.experimental.pallas import tpu as pltpu


def _round_up(x, m):
    return ((x + m - 1) // m) * m


def _gather_rows(ids_ref, w_hbm, buf, sem, base):
    """buf[t, :] = w_hbm[ids_ref[base + t], :] for t in [0, T).

    All T row DMAs are issued back-to-back (they overlap each other in the DMA
    engine) and then waited on, so every grid step is self-contained — safe under
    "parallel" (megacore) sharding of the token axis.
    """
    T = buf.shape[0]

    @pl.loop(0, T)
    def _issue(t):
        row = ids_ref[base + t]
        pltpu.make_async_copy(
            w_hbm.at[pl.ds(row, 1), :], buf.at[pl.ds(t, 1), :], sem
        ).start()

    @pl.loop(0, T)
    def _wait(t):
        # Source index is irrelevant for the wait; only the copy shape matters.
        pltpu.make_async_copy(
            w_hbm.at[pl.ds(0, 1), :], buf.at[pl.ds(t, 1), :], sem
        ).wait()


def _masked_gather_kernel(ids_ref, factor_ref, w_hbm, o_ref, buf, sem):
    """out = weight[ids] * factor, factor = keep_mask[ids] * scale / (1 - p) in f32.

    ids_ref   : SMEM (N_pad,) int32 token ids (scalar prefetch)
    factor_ref: VMEM (T, 1) f32 per-token scale
    w_hbm     : (V, D) raw HBM ref (pl.ANY)
    o_ref     : (T, D) output tile
    buf       : VMEM (T, D) gathered weight rows (weight dtype)
    sem       : DMA semaphore
    """
    i = pl.program_id(0)
    T = buf.shape[0]
    _gather_rows(ids_ref, w_hbm, buf, sem, i * T)
    o_ref[...] = (buf[...].astype(jnp.float32) * factor_ref[...]).astype(o_ref.dtype)


def _plain_gather_kernel(ids_ref, w_hbm, o_ref, buf, sem, *, scale):
    """Fast path: dropoute == 0. Pure gather (+ optional compile-time constant scale)."""
    i = pl.program_id(0)
    T = buf.shape[0]
    _gather_rows(ids_ref, w_hbm, buf, sem, i * T)
    if scale != 1.0:  # trace-time branch
        o_ref[...] = (buf[...].astype(jnp.float32) * jnp.float32(scale)).astype(o_ref.dtype)
    else:
        o_ref[...] = buf[...].astype(o_ref.dtype)


def drop_embedding(X, weight, keep_mask=None, *, dropoute=0.0, scale_embedding=None,
                   token_tile=None):
    """Pallas forward of DropEmbedding.

    X               : (B, S) int32 token ids
    weight          : (V, D) embedding table (stays in HBM, never copied/padded)
    keep_mask       : (V, 1) bernoulli(1 - dropoute) mask (required iff dropoute > 0)
    dropoute        : float dropout prob on vocab rows
    scale_embedding : scalar scale (falsy => no scale, as in the PyTorch module)
    """
    B, S = X.shape
    V, D = weight.shape
    dtype = weight.dtype
    itemsize = jnp.dtype(dtype).itemsize

    N = B * S
    if token_tile is None:
        token_tile = 256
    # Keep >= 2 token blocks when possible so "parallel" can shard across v7x's 2 TCs.
    token_tile = min(token_tile, _round_up(max(8, (N + 1) // 2), 8))
    # For very large D, shrink the tile so gather buffer + double-buffered output
    # stay well inside the scoped-VMEM budget.
    while token_tile > 8 and 3 * token_tile * D * itemsize > 24 * 1024 * 1024:
        token_tile //= 2
    token_tile = max(8, _round_up(token_tile, 8))

    N_pad = _round_up(N, token_tile)
    num_blocks = N_pad // token_tile

    ids = X.reshape(N).astype(jnp.int32)
    if N_pad != N:
        ids = jnp.pad(ids, (0, N_pad - N))   # padded tokens gather row 0; sliced off below

    scale = float(scale_embedding) if scale_embedding else 1.0
    use_mask = bool(dropoute)

    out_spec = pl.BlockSpec((token_tile, D), lambda i, ids_s: (i, 0))
    w_spec = pl.BlockSpec(memory_space=pl.ANY)          # raw HBM ref; rows DMA'd in-kernel
    scratch = [pltpu.VMEM((token_tile, D), dtype),      # gathered rows
               pltpu.SemaphoreType.DMA(())]

    # Only raise the scoped-VMEM limit when the tiles actually need it; cap at
    # ~85% of physical VMEM (v7x has only 64 MiB per TensorCore).
    bytes_needed = (token_tile * D * itemsize            # gather buffer
                    + 2 * token_tile * D * itemsize      # double-buffered output tile
                    + 2 * token_tile * 4                 # factor tile
                    + (1 << 20))                         # Mosaic internal scratch slack
    vmem_limit = None
    if bytes_needed > 16 * 1024 * 1024:                  # v5e scoped default is 16 MiB
        try:
            cap = int(0.85 * pltpu.get_tpu_info().vmem_capacity_bytes)
        except Exception:
            cap = int(0.85 * (64 << 20))
        vmem_limit = min(int(bytes_needed * 3 // 2), cap)

    cparams = pltpu.CompilerParams(
        dimension_semantics=("parallel",),
        vmem_limit_bytes=vmem_limit,
    )
    cost = pl.CostEstimate(
        flops=2 * N_pad * D,
        transcendentals=0,
        bytes_accessed=2 * N_pad * D * itemsize + 2 * N_pad * 4,
    )

    if use_mask:
        if keep_mask is None:
            raise ValueError("keep_mask is required when dropoute > 0")
        # Per-token f32 factor = keep_mask[id] * scale / (1 - dropoute).
        # Tiny N-element gather done once in plain JAX; applied once in f32 in-kernel.
        c = scale / (1.0 - float(dropoute))
        factor = keep_mask.reshape(V).astype(jnp.float32)[ids] * jnp.float32(c)
        factor = factor.reshape(N_pad, 1)
        kernel = _masked_gather_kernel
        in_specs = [pl.BlockSpec((token_tile, 1), lambda i, ids_s: (i, 0)), w_spec]
        args = (ids, factor, weight)
    else:
        kernel = functools.partial(_plain_gather_kernel, scale=scale)
        in_specs = [w_spec]
        args = (ids, weight)

    out_flat = pl.pallas_call(
        kernel,
        out_shape=jax.ShapeDtypeStruct((N_pad, D), dtype),
        grid_spec=pltpu.PrefetchScalarGridSpec(
            num_scalar_prefetch=1,
            grid=(num_blocks,),
            in_specs=in_specs,
            out_specs=out_spec,
            scratch_shapes=scratch,
        ),
        compiler_params=cparams,
        cost_estimate=cost,
    )(*args)

    return out_flat[:N].reshape(B, S, D)


if __name__ == "__main__":
    # Small, deterministic setup consistent with the module's __init__:
    #   vocab_size=64, embedding dim=32, batch=2, seq=8
    V, D = 64, 32
    B, S = 2, 8
    dropoute = 0.25
    scale_embedding = math.sqrt(D)

    key = jax.random.PRNGKey(0)
    k_w, k_x, k_m = jax.random.split(key, 3)

    weight = jax.random.normal(k_w, (V, D), dtype=jnp.float32)
    X = jax.random.randint(k_x, (B, S), 0, V, dtype=jnp.int32)
    # bernoulli_(1 - dropout) on a (vocab_size, 1) tensor, as in the PyTorch module.
    keep_mask = jax.random.bernoulli(k_m, 1.0 - dropoute, (V, 1)).astype(jnp.float32)

    # Dropout + scale path.
    out = drop_embedding(X, weight, keep_mask,
                         dropoute=dropoute, scale_embedding=scale_embedding)
    out = jax.block_until_ready(out)

    masked_w = keep_mask * weight / (1.0 - dropoute) * scale_embedding
    ref = masked_w[X]
    assert out.shape == (B, S, D)
    assert jnp.allclose(out, ref, atol=1e-5, rtol=1e-5), "mismatch vs reference"

    # Fast path: no dropout, no scale -> pure gather.
    out2 = drop_embedding(X, weight, None, dropoute=0.0, scale_embedding=None)
    out2 = jax.block_until_ready(out2)
    assert jnp.allclose(out2, weight[X], atol=1e-5, rtol=1e-5), "fast-path mismatch"

    # No dropout, constant scale folded at trace time.
    out3 = drop_embedding(X, weight, None, dropoute=0.0, scale_embedding=2.0)
    out3 = jax.block_until_ready(out3)
    assert jnp.allclose(out3, 2.0 * weight[X], atol=1e-5, rtol=1e-5), "scale-path mismatch"

    print("KERNEL_OK")
</pallas_src>

<mosaic_0001>
module attributes {stable_mosaic.version = 11 : i64} {
  func.func @_masked_gather_kernel(%arg0: i32, %arg1: memref<16xi32, #tpu.memory_space<smem>>, %arg2: memref<8x1xf32, #tpu.memory_space<vmem>>, %arg3: memref<64x32xf32, #tpu.memory_space<any>>, %arg4: memref<8x32xf32, #tpu.memory_space<vmem>>, %arg5: memref<8x32xf32, #tpu.memory_space<vmem>>, %arg6: memref<!tpu.dma_semaphore, #tpu.memory_space<semaphore_mem>>) attributes {dimension_semantics = [#tpu.dimension_semantics<parallel>], iteration_bounds = array<i64: 2>, scalar_prefetch = 1 : i64, scratch_operands = 2 : i64, tpu.core_type = #tpu.core_type<tc>, window_params = [{transform_indices = @transform_0, window_bounds = array<i64: 8, 1>}, {}, {transform_indices = @transform_2, window_bounds = array<i64: 8, 32>}]} {
    %c8_i32 = arith.constant 8 : i32
    %0 = arith.muli %arg0, %c8_i32 : i32
    %c0_i32 = arith.constant 0 : i32
    %c8_i32_0 = arith.constant 8 : i32
    %1 = arith.addi %c0_i32, %c8_i32_0 : i32
    %c1_i32 = arith.constant 1 : i32
    scf.for %arg7 = %c0_i32 to %1 step %c1_i32  : i32 {
      %c1_i32_11 = arith.constant 1 : i32
      %8 = arith.muli %arg7, %c1_i32_11 : i32
      %c0_i32_12 = arith.constant 0 : i32
      %9 = arith.addi %c0_i32_12, %8 : i32
      %10 = arith.addi %0, %9 : i32
      %11 = arith.index_cast %10 : i32 to index
      %12 = memref.load %arg1[%11] : memref<16xi32, #tpu.memory_space<smem>>
      %c0_i32_13 = arith.constant 0 : i32
      %13 = tpu.memref_slice %arg3[%12, %c0_i32_13] : memref<64x32xf32, #tpu.memory_space<any>> -> memref<1x32xf32, #tpu.memory_space<any>>
      %c0_i32_14 = arith.constant 0 : i32
      %14 = tpu.memref_slice %arg5[%9, %c0_i32_14] : memref<8x32xf32, #tpu.memory_space<vmem>> -> memref<1x32xf32, #tpu.memory_space<vmem>>
      tpu.enqueue_dma source(%13 : memref<1x32xf32, #tpu.memory_space<any>>) target(%14 : memref<1x32xf32, #tpu.memory_space<vmem>>) target_semaphore(%arg6 : memref<!tpu.dma_semaphore, #tpu.memory_space<semaphore_mem>>)
    }
    %c8_i32_1 = arith.constant 8 : i32
    %c0_i32_2 = arith.constant 0 : i32
    %c8_i32_3 = arith.constant 8 : i32
    %2 = arith.addi %c0_i32_2, %c8_i32_3 : i32
    %c1_i32_4 = arith.constant 1 : i32
    scf.for %arg7 = %c0_i32_2 to %2 step %c1_i32_4  : i32 {
      %c1_i32_11 = arith.constant 1 : i32
      %8 = arith.muli %arg7, %c1_i32_11 : i32
      %c0_i32_12 = arith.constant 0 : i32
      %9 = arith.addi %c0_i32_12, %8 : i32
      %c0_i32_13 = arith.constant 0 : i32
      %c0_i32_14 = arith.constant 0 : i32
      %10 = tpu.memref_slice %arg3[%c0_i32_13, %c0_i32_14] : memref<64x32xf32, #tpu.memory_space<any>> -> memref<1x32xf32, #tpu.memory_space<any>>
      %c0_i32_15 = arith.constant 0 : i32
      %11 = tpu.memref_slice %arg5[%9, %c0_i32_15] : memref<8x32xf32, #tpu.memory_space<vmem>> -> memref<1x32xf32, #tpu.memory_space<vmem>>
      tpu.wait_dma2 semaphore(%arg6 : memref<!tpu.dma_semaphore, #tpu.memory_space<semaphore_mem>>) src(%10 : memref<1x32xf32, #tpu.memory_space<any>>) dst(%11 : memref<1x32xf32, #tpu.memory_space<vmem>>)
    }
    %c8_i32_5 = arith.constant 8 : i32
    %c0 = arith.constant 0 : index
    %c0_6 = arith.constant 0 : index
    %3 = vector.load %arg5[%c0, %c0_6] : memref<8x32xf32, #tpu.memory_space<vmem>>, vector<8x32xf32>
    %c0_7 = arith.constant 0 : index
    %c0_8 = arith.constant 0 : index
    %4 = vector.load %arg2[%c0_7, %c0_8] : memref<8x1xf32, #tpu.memory_space<vmem>>, vector<8x1xf32>
    %5 = vector.broadcast %4 : vector<8x1xf32> to vector<8x32xf32>
    %6 = arith.mulf %3, %5 : vector<8x32xf32>
    %c0_9 = arith.constant 0 : index
    %c0_10 = arith.constant 0 : index
    %7 = vector.load %arg4[%c0_9, %c0_10] : memref<8x32xf32, #tpu.memory_space<vmem>>, vector<8x32xf32>
    tpu.vector_store %arg4[%c0_9, %c0_10], %6 {strides = array<i32>} : memref<8x32xf32, #tpu.memory_space<vmem>>, vector<8x32xf32>,
    return
  }
  func.func @transform_0(%arg0: i32, %arg1: memref<16xi32, #tpu.memory_space<smem>>) -> (i32, i32) {
    %c0_i32 = arith.constant 0 : i32
    %c0_i32_0 = arith.constant 0 : i32
    return %arg0, %c0_i32 : i32, i32
  }
  func.func @transform_2(%arg0: i32, %arg1: memref<16xi32, #tpu.memory_space<smem>>) -> (i32, i32) {
    %c0_i32 = arith.constant 0 : i32
    %c0_i32_0 = arith.constant 0 : i32
    return %arg0, %c0_i32 : i32, i32
  }
}

</mosaic_0001>

<llo_original>
// kernel: tpu_custom_call.1
$region0: #{tpu_custom_call.1}
  #allocation0 [shape = 'u32[]', space=smem, size = 0x4, offset = 0x4, fixed_abs, tag = 'smem constant byte address 0x4 - core index']
  #allocation1 [shape = 'u32[144,128]{1,0:T(1,128)}', space=vmem, size = 0x12000, scoped, tag = 'internal scratch']
  #allocation2 [shape = 'f32[8,32]{1,0:T(8,128)}', space=vmem, size = 0x1000, scoped, tag = 'scratch operand']
  #allocation3 [shape = 's32[1]{0}', space=sflag, size = 0x4, scoped, tag = 'scratch operand']
  #allocation4 [shape = 's32[1]{0}', space=sflag, size = 0x4, scoped, tag = 'scoped memory for tpu_custom_call.1']
  #allocation5 [shape = 'u8[512]{0}', space=smem, size = 0x200, scoped, tag = 'prefetched SMEM operand 0']
  #allocation8 [shape = 's32[]', space=sflag, size = 0x4, offset = 0, fixed_abs, tag = 'sflag constant byte address 0x0 - dummy sync flag']
  %s0 = inlined_call_operand.vmem [shape: s32[16], index: 0, kind: input, shape index: {}]
  %s1 = inlined_call_operand.vmem [shape: f32[16,1], index: 1, kind: input, shape index: {}]
  %s2 = inlined_call_operand.vmem [shape: f32[64,32], index: 2, kind: input, shape index: {}]
  %s3 = inlined_call_operand.hbm [shape: f32[16,32], index: 3, kind: output, shape index: {}]
  %s4 = sld [smem:[#allocation0]]
  $region81: #{tpu_custom_call.1} parent=0
    _
  %s6 = ssub.s32 1, %s4
  %s7 = scalar_select 0, %s6, %s4
  %s8 = sshll.u32 %s0, 4
  %s9 = int_to_ptr.vmem [resolvable:$true] %s8
  %11 = dma.vmem_to_smem %s9, 16, [#allocation5], [#allocation4]
  %12 = dma.done [#allocation4], 16
  %13 = sfence
  $region1: #{tpu_custom_call.1} parent=0
    #allocation6 [shape = 'u8[8192]{0}', space=vmem, size = 0x2000, scoped, tag = 'output window, operand 0']
    #allocation7 [shape = 's32[2]{0}', space=sflag, size = 0x8, scoped, tag = 'scoped memory for tpu_custom_call.1']
    %14 = vsyncpa [#allocation7], 0
    %s15 = scalar_lea.sflag [#allocation7], 1
    %16 = vsyncpa %s15, 0
    loop: start=0, step=1, limit=4
    $region2: #{tpu_custom_call.1} parent=1 // loop_pre_header
      _
    $region3: #{tpu_custom_call.1} parent=1 // loop_header
      %s18 = sphi 0, %s22
      %p19 = scmp.ge.s32.totalorder %s18, 4
      %s28 = sphi 0, %s30
      %s31 = sphi 0, %s28
      %s32 = sphi 0, %s31
      %s48 = sphi 0, %s32
      %s54 = sphi 0, %s56
      %s57 = sphi 0, %s54
      %s58 = sphi 0, %s57
      %s74 = sphi 0, %s58
    $region4: #{tpu_custom_call.1} parent=1 // loop_header_branch
      %21 = sbr.rel (%p19) target = $region8
    $region5: #{tpu_custom_call.1} parent=1 // loop_body
      %s23 = ssub.s32 %s18, 1
      %s24 = ssub.s32 %s18, 2
      %s25 = sadd.s32 %s18, 1
      %s26 = ssub.s32 %s18, %s25
      %p27 = scmp.eq.s32.totalorder %s26, 0
      %s29 = sadd.s32 %s28, 1
      %s30 = scalar_select %p27, %s28, %s29
      %p33 = pneg %p27
      %p34 = scmp.eq.s32.totalorder %s18, 1
      %p35 = por %p33, %p34
      %p36 = scmp.ne.s32.totalorder %s28, %s31
      %p37 = scmp.eq.s32.totalorder %s18, 0
      %p38 = por %p36, %p37
      %p39 = scmp.ne.s32.totalorder %s28, %s31
      %p40 = scmp.eq.s32.totalorder %s23, 1
      %p41 = por %p39, %p40
      %p42 = scmp.ne.s32.totalorder %s31, %s32
      %p43 = scmp.eq.s32.totalorder %s23, 0
      %p44 = por %p42, %p43
      %p45 = scmp.ne.s32.totalorder %s31, %s32
      %p46 = scmp.eq.s32.totalorder %s24, 1
      %p47 = por %p45, %p46
      %p49 = scmp.ne.s32.totalorder %s32, %s48
      %p50 = scmp.eq.s32.totalorder %s24, 0
      %p51 = por %p49, %p50
      %s52 = ssub.s32 %s18, %s25
      %p53 = scmp.eq.s32.totalorder %s52, 0
      %s55 = sadd.s32 %s54, 1
      %s56 = scalar_select %p53, %s54, %s55
      %p59 = pneg %p53
      %p60 = scmp.eq.s32.totalorder %s18, 1
      %p61 = por %p59, %p60
      %p62 = scmp.ne.s32.totalorder %s54, %s57
      %p63 = scmp.eq.s32.totalorder %s18, 0
      %p64 = por %p62, %p63
      %p65 = scmp.ne.s32.totalorder %s54, %s57
      %p66 = scmp.eq.s32.totalorder %s23, 1
      %p67 = por %p65, %p66
      %p68 = scmp.ne.s32.totalorder %s57, %s58
      %p69 = scmp.eq.s32.totalorder %s23, 0
      %p70 = por %p68, %p69
      %p71 = scmp.ne.s32.totalorder %s57, %s58
      %p72 = scmp.eq.s32.totalorder %s24, 1
      %p73 = por %p71, %p72
      %p75 = scmp.ne.s32.totalorder %s58, %s74
      %p76 = scmp.eq.s32.totalorder %s24, 0
      %p77 = por %p75, %p76
      %p78 = scmp.le.s32.totalorder 1, %s18
      %p79 = scmp.lt.s32.totalorder %s18, 3
      %p80 = pnand %p78, %p79
      %p81 = pneg %p80
      // Predicated region
      $region9: #{tpu_custom_call.1} parent=5 // pred_check
        _
      $region10: #{tpu_custom_call.1} parent=5 // pred_check_branch
        %83 = sbr.rel (%p80) target = $region12
      $region11: #{tpu_custom_call.1} parent=5 // pred_region
        %s84 = ssub.s32 %s18, 1
      $region12: #{tpu_custom_call.1} parent=5 // pred_fallthru
        _
      %p85 = scmp.lt.s32.totalorder %s18, 2
      // Predicated region
      $region13: #{tpu_custom_call.1} parent=5 // pred_check
        %p86 = pneg %p85
      $region14: #{tpu_custom_call.1} parent=5 // pred_check_branch
        %88 = sbr.rel (%p86) target = $region16
      $region15: #{tpu_custom_call.1} parent=5 // pred_region
        // Predicated region
        $region17: #{tpu_custom_call.1} parent=15 // pred_check
          %p89 = pneg %p38
        $region18: #{tpu_custom_call.1} parent=15 // pred_check_branch
          %91 = sbr.rel (%p89) target = $region20
        $region19: #{tpu_custom_call.1} parent=15 // pred_region
          %p92 = scmp.lt.s32.totalorder %s18, 1
          %s93 = scalar_select %p92, %s18, 1
          %s94 = smul.addr %s93, 8
          %s95 = scalar_lea.vmem %s1, %s94
        $region20: #{tpu_custom_call.1} parent=15 // pred_fallthru
          _
      $region16: #{tpu_custom_call.1} parent=5 // pred_fallthru
        _
      %p96 = scmp.le.s32.totalorder 1, %s18
      %p97 = scmp.lt.s32.totalorder %s18, 3
      %p98 = pnand %p96, %p97
      %p99 = pneg %p98
      // Predicated region
      $region21: #{tpu_custom_call.1} parent=5 // pred_check
        _
      $region22: #{tpu_custom_call.1} parent=5 // pred_check_branch
        %101 = sbr.rel (%p98) target = $region24
      $region23: #{tpu_custom_call.1} parent=5 // pred_region
        %s102 = ssub.s32 %s18, 1
        %p103 = scmp.lt.s32.totalorder %s23, 1
        %s104 = scalar_select %p103, %s23, 1
        %s105 = smul.addr %s104, 8
        %s106 = scalar_lea.vmem %s1, %s105
        %p107 = pneg %p44
        %p108 = pneg %p41
        %p109 = pneg %p70
        %p110 = pneg %p67
        %s111 = sand.u32 %s57, 1
        %s112 = scalar_lea.sflag [#allocation7], %s111
        %s113 = sand.u32 %s57, 1
        %s114 = smul.addr %s113, 8
        %s115 = scalar_lea.vmem [#allocation6], %s114
        %p116 = scmp.lt.s32.totalorder %s23, 1
        %s117 = scalar_select %p116, %s23, 1
        %s118 = smul.addr %s117, 8
        %s119 = scalar_lea.vmem %s1, %s118
        %s120 = smul.u32 %s23, 8
        loop: start=0, step=1, limit=8
        $region25: #{tpu_custom_call.1} parent=23 // loop_pre_header
          _
        $region26: #{tpu_custom_call.1} parent=23 // loop_header
          %s122 = sphi 0, %s126
          %p123 = scmp.ge.s32.totalorder %s122, 8
        $region27: #{tpu_custom_call.1} parent=23 // loop_header_branch
          %125 = sbr.rel (%p123) target = $region31
        $region28: #{tpu_custom_call.1} parent=23 // loop_body
          %s127 = sadd.s32 %s120, %s122
          %s128 = sld [smem:[#allocation5 + %s127]]
          %s129 = scalar_lea.vmem %s2, %s128
          %s130 = scalar_lea.vmem [#allocation2], %s122
          %p132 = scmp.lt.u32.totalorder 1, 8
          %p133 = pneg %p132
          // Predicated region
          $region32: #{tpu_custom_call.1} parent=28 // pred_check
            _
          $region33: #{tpu_custom_call.1} parent=28 // pred_check_branch
            %135 = sbr.rel (%p132) target = $region35
          $region34: #{tpu_custom_call.1} parent=28 // pred_region
            %s150 = sand.u32 1, 7
            %p151 = scmp.eq.s32.totalorder %s150, 0
            %p152 = pneg %p151
            // Predicated region
            $region47: #{tpu_custom_call.1} parent=34 // pred_check
              _
            $region48: #{tpu_custom_call.1} parent=34 // pred_check_branch
              %154 = sbr.rel (%p151) target = $region50
            $region49: #{tpu_custom_call.1} parent=34 // pred_region
              %s155 = sand.u32 1, 7
              %s156 = ssub.s32 1, %s155
              %s157 = scalar_lea.vmem %s129, %s156
              %s158 = ssub.s32 1, %s155
              %s159 = scalar_lea.vmem %s130, %s158 [#allocation2]
              %s160 = sshllo.u32 0, %s155
              loop: start=0, step=1, limit=1
              $region51: #{tpu_custom_call.1} parent=49 // loop_pre_header
                _
              $region52: #{tpu_custom_call.1} parent=49 // loop_header
                %s162 = sphi 0, %s166
                %p163 = scmp.ge.s32.totalorder %s162, 1
                %s167 = sphi %s157, %s157
                %s168 = sphi %s159, %s159
              $region53: #{tpu_custom_call.1} parent=49 // loop_header_branch
                %165 = sbr.rel (%p163) target = $region57
              $region54: #{tpu_custom_call.1} parent=49 // loop_body
                %v169 = vld [vmem:[%s167] sm:%s160]
                %170 = vst [vmem:[%s168] sm:%s160] %v169
              $region55: #{tpu_custom_call.1} parent=49 // loop_footer
                %s166 = sadd.s32 1, %s162
              $region56: #{tpu_custom_call.1} parent=49 // loop_footer_branch
                %161 = sbr.rel target = $region52
              $region57: #{tpu_custom_call.1} parent=49 // loop_exit
                _
            $region50: #{tpu_custom_call.1} parent=34 // pred_fallthru
              _
          $region35: #{tpu_custom_call.1} parent=28 // pred_fallthru
            _
          // Predicated region
          $region36: #{tpu_custom_call.1} parent=28 // pred_check
            %p136 = pneg %p132
          $region37: #{tpu_custom_call.1} parent=28 // pred_check_branch
            %138 = sbr.rel (%p136) target = $region39
          $region38: #{tpu_custom_call.1} parent=28 // pred_region
            %s139 = sshllo.u32 0, 1
            loop: start=0, step=1, limit=1
            $region40: #{tpu_custom_call.1} parent=38 // loop_pre_header
              _
            $region41: #{tpu_custom_call.1} parent=38 // loop_header
              %s141 = sphi 0, %s145
              %p142 = scmp.ge.s32.totalorder %s141, 1
              %s146 = sphi %s129, %s129
              %s147 = sphi %s130, %s130
            $region42: #{tpu_custom_call.1} parent=38 // loop_header_branch
              %144 = sbr.rel (%p142) target = $region46
            $region43: #{tpu_custom_call.1} parent=38 // loop_body
              %v148 = vld [vmem:[%s146] sm:%s139]
              %149 = vst [vmem:[%s147] sm:%s139] %v148
            $region44: #{tpu_custom_call.1} parent=38 // loop_footer
              %s145 = sadd.s32 1, %s141
            $region45: #{tpu_custom_call.1} parent=38 // loop_footer_branch
              %140 = sbr.rel target = $region41
            $region46: #{tpu_custom_call.1} parent=38 // loop_exit
              _
          $region39: #{tpu_custom_call.1} parent=28 // pred_fallthru
            _
          // Predicated region
          $region58: #{tpu_custom_call.1} parent=28 // pred_check
            _
          $region59: #{tpu_custom_call.1} parent=28 // pred_check_branch
            %173 = sbr.rel (0) target = $region61
          $region60: #{tpu_custom_call.1} parent=28 // pred_region
            %174 = vsyncadd [#allocation3], 16
          $region61: #{tpu_custom_call.1} parent=28 // pred_fallthru
            _
        $region29: #{tpu_custom_call.1} parent=23 // loop_footer
          %s126 = sadd.s32 1, %s122
        $region30: #{tpu_custom_call.1} parent=23 // loop_footer_branch
          %121 = sbr.rel target = $region26
        $region31: #{tpu_custom_call.1} parent=23 // loop_exit
          _
        loop: start=0, step=1, limit=8
        $region62: #{tpu_custom_call.1} parent=23 // loop_pre_header
          _
        $region63: #{tpu_custom_call.1} parent=23 // loop_header
          %s176 = sphi 0, %s180
          %p177 = scmp.ge.s32.totalorder %s176, 8
        $region64: #{tpu_custom_call.1} parent=23 // loop_header_branch
          %179 = sbr.rel (%p177) target = $region68
        $region65: #{tpu_custom_call.1} parent=23 // loop_body
          %s181 = smul.u32 1, 1
          %s182 = sshll.u32 %s181, 4
          %183 = dma.done [#allocation3], %s182
        $region66: #{tpu_custom_call.1} parent=23 // loop_footer
          %s180 = sadd.s32 1, %s176
        $region67: #{tpu_custom_call.1} parent=23 // loop_footer_branch
          %175 = sbr.rel target = $region63
        $region68: #{tpu_custom_call.1} parent=23 // loop_exit
          _
        %v184 = vld [vmem:[#allocation2] sm:$0xff]
        %v185 = vld [vmem:[%s119] sm:$0xff]
        %187 = vset.pattern.permute.xlu0 0
        %188 = vperm.xlu0 %187, %v185
        %v189 = vpop.permute.xlu0 %188
        %v191 = vmul.f32 %v184, %v189
        %vm192 = vcmask 261120
        %193 = vst.msk [vmem:[%s115] sm:$0xff] %vm192, %v191
        %s194 = sand.u32 %s57, 1
        %s195 = scalar_lea.sflag [#allocation7], %s194
        %s196 = sand.u32 %s57, 1
        %s197 = smul.addr %s196, 8
        %s198 = scalar_lea.vmem [#allocation6], %s197
        // Predicated region
        $region69: #{tpu_custom_call.1} parent=23 // pred_check
          %p199 = pneg %p67
        $region70: #{tpu_custom_call.1} parent=23 // pred_check_branch
          %201 = sbr.rel (%p199) target = $region72
        $region71: #{tpu_custom_call.1} parent=23 // pred_region
          %s203 = ssub.s32 128, 128
          %204 = vsyncadd %s195, %s203
          %s205 = smul.addr %s23, 128
          %s206 = scalar_lea.hbm %s3, %s205
          %s208 = sshll.u32 %s198, 4
          %s209 = int_to_ptr.vmem [resolvable:$true] %s208
          %211 = dma.vmem_to_hbm [thread:$0]  %s209, 128, %s206, %s195
        $region72: #{tpu_custom_call.1} parent=23 // pred_fallthru
          _
      $region24: #{tpu_custom_call.1} parent=5 // pred_fallthru
        _
      %p212 = scmp.le.s32.totalorder 2, %s18
      // Predicated region
      $region73: #{tpu_custom_call.1} parent=5 // pred_check
        %p213 = pneg %p212
      $region74: #{tpu_custom_call.1} parent=5 // pred_check_branch
        %215 = sbr.rel (%p213) target = $region76
      $region75: #{tpu_custom_call.1} parent=5 // pred_region
        %s216 = ssub.s32 %s18, 2
        // Predicated region
        $region77: #{tpu_custom_call.1} parent=75 // pred_check
          %p217 = pneg %p73
        $region78: #{tpu_custom_call.1} parent=75 // pred_check_branch
          %219 = sbr.rel (%p217) target = $region80
        $region79: #{tpu_custom_call.1} parent=75 // pred_region
          %s220 = sand.u32 %s58, 1
          %s221 = scalar_lea.sflag [#allocation7], %s220
          %s222 = sand.u32 %s58, 1
          %s223 = smul.addr %s222, 8
          %s224 = scalar_lea.vmem [#allocation6], %s223
          %225 = dma.done %s221, 128
        $region80: #{tpu_custom_call.1} parent=75 // pred_fallthru
          _
      $region76: #{tpu_custom_call.1} parent=5 // pred_fallthru
        _
    $region6: #{tpu_custom_call.1} parent=1 // loop_footer
      %s22 = sadd.s32 1, %s18
    $region7: #{tpu_custom_call.1} parent=1 // loop_footer_branch
      %17 = sbr.rel target = $region3
    $region8: #{tpu_custom_call.1} parent=1 // loop_exit
      _
    %226 = vsyncpa [#allocation7], 1
    %s227 = scalar_lea.sflag [#allocation7], 1
    %228 = vsyncpa %s227, 1
  %229 = vsyncmov [#allocation3]
  %s230 = vpop.sfrf %229
  %p231 = scmp.eq.s32.totalorder %s230, 0
  %p232 = pneg %p231
  %234 = shalt.err (%p232)

</llo_original>
